<compile_context>
chip_gen: v5e
topology: v5e:2x2
jax: 0.10.0
libtpu: 0.0.40
codegen_flags: <defaults>
</compile_context>

<pallas_src>
import functools

import jax
import jax.numpy as jnp
import numpy as np
from jax.experimental import pallas as pl
from jax.experimental.pallas import tpu as pltpu

DEFAULT_TILE_P = 2048          # pixels per grid step (lane axis)
ONEHOT_VMEM_BUDGET = 2 << 20   # keep the (F, TILE_P) one-hot around <= 2 MiB


def _round_up(x, m):
    return ((x + m - 1) // m) * m


def nocs_shader_kernel(packed_ref, fattr_ref, out_ref, *, bg):
    # packed_ref: (4, TP) f32   row 0 = nearest face id (as f32, -1 = background)
    #                           rows 1..3 = barycentric coords of that face
    # fattr_ref : (12, F) f32   row 4*v + c = NOCS channel c of vertex v (c=3 is 0)
    # out_ref   : (4, TP) f32   rows 0..2 = blended NOCS colors, row 3 = alpha (1)
    # bg        : static (r, g, b) python floats (BlendParams.background_color)
    packed = packed_ref[...]
    p2f = packed[0:1, :]                      # (1, TP) face id as float
    b0 = packed[1:2, :]
    b1 = packed[2:3, :]
    b2 = packed[3:4, :]
    tp = packed.shape[1]
    num_faces = fattr_ref.shape[1]

    # One-hot gather of per-face vertex colors, fused into a single MXU matmul.
    # Background pixels (face id < 0) match no face -> all-zero column -> zero
    # texel, matching interpolate_face_attributes' masking in pytorch3d.
    # (face ids are exact in f32 up to 2^24 faces.)
    ids = jax.lax.broadcasted_iota(jnp.int32, (num_faces, tp), 0)
    onehot = (ids.astype(jnp.float32) == p2f).astype(jnp.float32)    # (F, TP)
    gathered = jnp.dot(fattr_ref[...], onehot,
                       preferred_element_type=jnp.float32)           # (12, TP)

    # Barycentric interpolation on the VPU.
    texel = (b0 * gathered[0:3, :]
             + b1 * gathered[4:7, :]
             + b2 * gathered[8:11, :])                                # (3, TP)

    # hard_rgb_blend: background where nearest face is invalid, alpha = 1.
    is_bg = (p2f < 0.0).astype(jnp.float32)                           # (1, TP)
    out_ref[0:1, :] = texel[0:1, :] + bg[0] * is_bg
    out_ref[1:2, :] = texel[1:2, :] + bg[1] * is_bg
    out_ref[2:3, :] = texel[2:3, :] + bg[2] * is_bg
    out_ref[3:4, :] = jnp.ones((1, tp), jnp.float32)


def hard_nocs_shader(pix_to_face, bary_coords, face_verts_nocs, background_color,
                     *, tile_p=DEFAULT_TILE_P):
    """Pallas forward of HardNOCSShader.

    pix_to_face     : (N, H, W, K) int32     fragments.pix_to_face
    bary_coords     : (N, H, W, K, 3) float  fragments.bary_coords
    face_verts_nocs : (F, 3, 3) float        per-face, per-vertex NOCS color
    background_color: length-3, static BlendParams-style config
    returns         : (N, H, W, 4) float32
    """
    N, H, W, K = pix_to_face.shape
    F = face_verts_nocs.shape[0]
    P = N * H * W

    # Only k=0 (nearest face) feeds hard_rgb_blend; texels for k>0 are
    # unobservable in the module output, so they are skipped.
    # Channel-major packing: pixels on the LANE axis.
    p2f0 = pix_to_face[..., 0].reshape(1, P).astype(jnp.float32)
    bary0 = jnp.transpose(
        bary_coords[..., 0, :].reshape(P, 3).astype(jnp.float32))     # (3, P)
    packed = jnp.concatenate([p2f0, bary0], axis=0)                   # (4, P)

    # Tile sizing: large tiles amortize per-grid-step overhead; cap so the
    # in-kernel (F, tile_p) one-hot stays small in VMEM.
    tile_p = min(tile_p, _round_up(P, 128))
    max_tile_for_f = max(128, (ONEHOT_VMEM_BUDGET // max(4 * F, 1)) // 128 * 128)
    tile_p = min(tile_p, max_tile_for_f)

    p_pad = _round_up(P, tile_p)
    if p_pad != P:
        # Pad pixels are marked background (face id -1) and sliced off below.
        packed = jnp.pad(packed, ((0, 0), (0, p_pad - P)), constant_values=-1.0)

    # (F, 3, 3) -> (12, F): row 4*v + c = channel c of vertex v, row 4*v + 3 = 0.
    fattr = jnp.transpose(face_verts_nocs.astype(jnp.float32), (1, 2, 0))  # (3,3,F)
    fattr = jnp.pad(fattr, ((0, 0), (0, 1), (0, 0))).reshape(12, F)

    # BlendParams.background_color is a static config -> closure constants.
    bg = tuple(float(c) for c in np.asarray(background_color, np.float32)[:3])
    kernel = functools.partial(nocs_shader_kernel, bg=bg)

    out = pl.pallas_call(
        kernel,
        out_shape=jax.ShapeDtypeStruct((4, p_pad), jnp.float32),
        grid_spec=pltpu.PrefetchScalarGridSpec(
            num_scalar_prefetch=0,
            grid=(p_pad // tile_p,),
            in_specs=[
                pl.BlockSpec((4, tile_p), lambda i: (0, i)),
                # Constant block index -> the face-attribute table is DMA'd once.
                pl.BlockSpec((12, F), lambda i: (0, 0)),
            ],
            out_specs=pl.BlockSpec((4, tile_p), lambda i: (0, i)),
        ),
        compiler_params=pltpu.CompilerParams(
            dimension_semantics=("parallel",)),
    )(packed, fattr)

    out = out[:, :P]                                   # drop pad pixels
    return jnp.transpose(out).reshape(N, H, W, 4)


def reference(pix_to_face, bary_coords, face_verts_nocs, background_color):
    """Plain-JAX mirror of sample_textures (TexturesVertex) + hard_rgb_blend."""
    p2f0 = pix_to_face[..., 0]
    bary0 = bary_coords[..., 0, :]
    mask = p2f0 < 0
    idx = jnp.where(mask, 0, p2f0)
    face_vals = face_verts_nocs[idx]                         # (N,H,W,3,3)
    texel = (bary0[..., None] * face_vals).sum(-2)           # (N,H,W,3)
    texel = jnp.where(mask[..., None], 0.0, texel)
    colors = jnp.where(mask[..., None], background_color, texel)
    alpha = jnp.ones(colors.shape[:-1] + (1,), jnp.float32)
    return jnp.concatenate([colors, alpha], axis=-1)


if __name__ == "__main__":
    N, H, W, K, F = 2, 16, 16, 4, 16

    key = jax.random.PRNGKey(0)
    k1, k2, k3 = jax.random.split(key, 3)

    # Synthetic "fragments": some pixels are background (-1).
    pix_to_face = jax.random.randint(k1, (N, H, W, K), -1, F, dtype=jnp.int32)
    bary_raw = jax.random.uniform(k2, (N, H, W, K, 3), minval=0.01, maxval=1.0)
    bary_coords = bary_raw / bary_raw.sum(-1, keepdims=True)

    # Synthetic "mesh" NOCS vertex colors per face, deterministic init.
    face_verts_nocs = jax.random.uniform(k3, (F, 3, 3), dtype=jnp.float32)

    # BlendParams() default background color (1., 1., 1.).
    background_color = jnp.array([1.0, 1.0, 1.0], jnp.float32)

    images = hard_nocs_shader(pix_to_face, bary_coords, face_verts_nocs,
                              background_color)
    images = jax.block_until_ready(images)

    ref = reference(pix_to_face, bary_coords, face_verts_nocs, background_color)
    assert images.shape == (N, H, W, 4)
    assert images.dtype == jnp.float32
    assert jnp.allclose(images, ref, atol=1e-5, rtol=1e-5), "mismatch vs reference"

    print("KERNEL_OK")
</pallas_src>

<mosaic_0001>
module attributes {stable_mosaic.version = 11 : i64} {
  func.func @nocs_shader_kernel(%arg0: i32, %arg1: memref<4x512xf32, #tpu.memory_space<vmem>>, %arg2: memref<12x16xf32, #tpu.memory_space<vmem>>, %arg3: memref<4x512xf32, #tpu.memory_space<vmem>>) attributes {dimension_semantics = [#tpu.dimension_semantics<parallel>], iteration_bounds = array<i64: 1>, scalar_prefetch = 0 : i64, scratch_operands = 0 : i64, tpu.core_type = #tpu.core_type<tc>, window_params = [{transform_indices = @transform_0, window_bounds = array<i64: 4, 512>}, {pipeline_mode = #tpu.pipeline_mode<synchronous>, transform_indices = @transform_1, window_bounds = array<i64: 12, 16>}, {transform_indices = @transform_2, window_bounds = array<i64: 4, 512>}]} {
    %c0 = arith.constant 0 : index
    %c0_0 = arith.constant 0 : index
    %0 = vector.load %arg1[%c0, %c0_0] : memref<4x512xf32, #tpu.memory_space<vmem>>, vector<4x512xf32>
    %1 = vector.extract_strided_slice %0 {offsets = [0, 0], sizes = [1, 512], strides = [1, 1]} : vector<4x512xf32> to vector<1x512xf32>
    %2 = vector.extract_strided_slice %0 {offsets = [1, 0], sizes = [1, 512], strides = [1, 1]} : vector<4x512xf32> to vector<1x512xf32>
    %3 = vector.extract_strided_slice %0 {offsets = [2, 0], sizes = [1, 512], strides = [1, 1]} : vector<4x512xf32> to vector<1x512xf32>
    %4 = vector.extract_strided_slice %0 {offsets = [3, 0], sizes = [1, 512], strides = [1, 1]} : vector<4x512xf32> to vector<1x512xf32>
    %5 = tpu.iota {dimensions = array<i32: 0>} : vector<16x512xi32>
    %6 = arith.sitofp %5 : vector<16x512xi32> to vector<16x512xf32>
    %7 = vector.broadcast %1 : vector<1x512xf32> to vector<16x512xf32>
    %8 = arith.cmpf oeq, %6, %7 : vector<16x512xf32>
    %9 = arith.extui %8 : vector<16x512xi1> to vector<16x512xi32>
    %10 = arith.sitofp %9 : vector<16x512xi32> to vector<16x512xf32>
    %c0_1 = arith.constant 0 : index
    %c0_2 = arith.constant 0 : index
    %11 = vector.load %arg2[%c0_1, %c0_2] : memref<12x16xf32, #tpu.memory_space<vmem>>, vector<12x16xf32>
    %cst = arith.constant dense<0.000000e+00> : vector<12x512xf32>
    %12 = tpu.matmul %11, %10, %cst {dimension_numbers = #tpu.dot_dimension_numbers<[1], [0], [0], [1], [0, 0, 1, 1], [], []>} : vector<12x16xf32>, vector<16x512xf32>, vector<12x512xf32> -> vector<12x512xf32>
    %13 = vector.extract_strided_slice %12 {offsets = [0, 0], sizes = [3, 512], strides = [1, 1]} : vector<12x512xf32> to vector<3x512xf32>
    %14 = vector.broadcast %2 : vector<1x512xf32> to vector<3x512xf32>
    %15 = arith.mulf %14, %13 : vector<3x512xf32>
    %16 = vector.extract_strided_slice %12 {offsets = [4, 0], sizes = [3, 512], strides = [1, 1]} : vector<12x512xf32> to vector<3x512xf32>
    %17 = vector.broadcast %3 : vector<1x512xf32> to vector<3x512xf32>
    %18 = arith.mulf %17, %16 : vector<3x512xf32>
    %19 = arith.addf %15, %18 : vector<3x512xf32>
    %20 = vector.extract_strided_slice %12 {offsets = [8, 0], sizes = [3, 512], strides = [1, 1]} : vector<12x512xf32> to vector<3x512xf32>
    %21 = vector.broadcast %4 : vector<1x512xf32> to vector<3x512xf32>
    %22 = arith.mulf %21, %20 : vector<3x512xf32>
    %23 = arith.addf %19, %22 : vector<3x512xf32>
    %cst_3 = arith.constant 0.000000e+00 : f32
    %24 = vector.broadcast %cst_3 : f32 to vector<1x512xf32>
    %25 = arith.cmpf olt, %1, %24 : vector<1x512xf32>
    %26 = arith.extui %25 : vector<1x512xi1> to vector<1x512xi32>
    %27 = arith.sitofp %26 : vector<1x512xi32> to vector<1x512xf32>
    %28 = vector.extract_strided_slice %23 {offsets = [0, 0], sizes = [1, 512], strides = [1, 1]} : vector<3x512xf32> to vector<1x512xf32>
    %cst_4 = arith.constant 1.000000e+00 : f32
    %29 = vector.broadcast %cst_4 : f32 to vector<1x512xf32>
    %30 = arith.mulf %29, %27 : vector<1x512xf32>
    %31 = arith.addf %28, %30 : vector<1x512xf32>
    %c0_5 = arith.constant 0 : index
    %c0_6 = arith.constant 0 : index
    %32 = vector.load %arg3[%c0_5, %c0_6] : memref<4x512xf32, #tpu.memory_space<vmem>>, vector<1x512xf32>
    tpu.vector_store %arg3[%c0_5, %c0_6], %31 {strides = array<i32>} : memref<4x512xf32, #tpu.memory_space<vmem>>, vector<1x512xf32>,
    %33 = vector.extract_strided_slice %23 {offsets = [1, 0], sizes = [1, 512], strides = [1, 1]} : vector<3x512xf32> to vector<1x512xf32>
    %cst_7 = arith.constant 1.000000e+00 : f32
    %34 = vector.broadcast %cst_7 : f32 to vector<1x512xf32>
    %35 = arith.mulf %34, %27 : vector<1x512xf32>
    %36 = arith.addf %33, %35 : vector<1x512xf32>
    %c1 = arith.constant 1 : index
    %c0_8 = arith.constant 0 : index
    %37 = vector.load %arg3[%c1, %c0_8] : memref<4x512xf32, #tpu.memory_space<vmem>>, vector<1x512xf32>
    tpu.vector_store %arg3[%c1, %c0_8], %36 {strides = array<i32>} : memref<4x512xf32, #tpu.memory_space<vmem>>, vector<1x512xf32>,
    %38 = vector.extract_strided_slice %23 {offsets = [2, 0], sizes = [1, 512], strides = [1, 1]} : vector<3x512xf32> to vector<1x512xf32>
    %cst_9 = arith.constant 1.000000e+00 : f32
    %39 = vector.broadcast %cst_9 : f32 to vector<1x512xf32>
    %40 = arith.mulf %39, %27 : vector<1x512xf32>
    %41 = arith.addf %38, %40 : vector<1x512xf32>
    %c2 = arith.constant 2 : index
    %c0_10 = arith.constant 0 : index
    %42 = vector.load %arg3[%c2, %c0_10] : memref<4x512xf32, #tpu.memory_space<vmem>>, vector<1x512xf32>
    tpu.vector_store %arg3[%c2, %c0_10], %41 {strides = array<i32>} : memref<4x512xf32, #tpu.memory_space<vmem>>, vector<1x512xf32>,
    %cst_11 = arith.constant 1.000000e+00 : f32
    %43 = vector.broadcast %cst_11 : f32 to vector<1x512xf32>
    %c3 = arith.constant 3 : index
    %c0_12 = arith.constant 0 : index
    %44 = vector.load %arg3[%c3, %c0_12] : memref<4x512xf32, #tpu.memory_space<vmem>>, vector<1x512xf32>
    tpu.vector_store %arg3[%c3, %c0_12], %43 {strides = array<i32>} : memref<4x512xf32, #tpu.memory_space<vmem>>, vector<1x512xf32>,
    return
  }
  func.func @transform_0(%arg0: i32) -> (i32, i32) {
    %c0_i32 = arith.constant 0 : i32
    %c0_i32_0 = arith.constant 0 : i32
    return %c0_i32, %arg0 : i32, i32
  }
  func.func @transform_1(%arg0: i32) -> (i32, i32) {
    %c0_i32 = arith.constant 0 : i32
    %c0_i32_0 = arith.constant 0 : i32
    %c0_i32_1 = arith.constant 0 : i32
    return %c0_i32, %c0_i32_0 : i32, i32
  }
  func.func @transform_2(%arg0: i32) -> (i32, i32) {
    %c0_i32 = arith.constant 0 : i32
    %c0_i32_0 = arith.constant 0 : i32
    return %c0_i32, %arg0 : i32, i32
  }
}

</mosaic_0001>

<llo_original>
// kernel: tpu_custom_call.1
$region0: #{tpu_custom_call.1}
  #allocation0 [shape = 'u32[]', space=smem, size = 0x4, offset = 0x4, fixed_abs, tag = 'smem constant byte address 0x4 - core index']
  #allocation1 [shape = 'u32[72,128]{1,0:T(1,128)}', space=vmem, size = 0x9000, scoped, tag = 'internal scratch']
  %s0 = inlined_call_operand.hbm [shape: f32[4,512], index: 0, kind: input, shape index: {}]
  %s1 = inlined_call_operand.hbm [shape: f32[12,16], index: 1, kind: input, shape index: {}]
  %s2 = inlined_call_operand.hbm [shape: f32[4,512], index: 2, kind: output, shape index: {}]
  %s3 = sld [smem:[#allocation0]]
  $region26: #{tpu_custom_call.1} parent=0
    _
  %s5 = ssub.s32 1, %s3
  %s6 = scalar_select 0, %s5, %s3
  $region1: #{tpu_custom_call.1} parent=0
    #allocation2 [shape = 'u8[8192]{0}', space=vmem, size = 0x2000, scoped, tag = 'input window, operand 0, single buffered']
    #allocation3 [shape = 's32[1]{0}', space=sflag, size = 0x4, scoped, tag = 'scoped memory for tpu_custom_call.1']
    #allocation4 [shape = 's32[1]{0}', space=sflag, size = 0x4, scoped, tag = 'scoped memory for tpu_custom_call.1']
    #allocation5 [shape = 'u8[8192]{0}', space=vmem, size = 0x2000, scoped, tag = 'input window, operand 1, single buffered']
    #allocation6 [shape = 's32[1]{0}', space=sflag, size = 0x4, scoped, tag = 'scoped memory for tpu_custom_call.1']
    #allocation7 [shape = 'u8[8192]{0}', space=vmem, size = 0x2000, scoped, tag = 'output window, operand 0, single buffered']
    %7 = vsyncpa [#allocation3], 0
    %8 = vsyncpa [#allocation6], 0
    %9 = vsyncpa [#allocation4], 0
    // Predicated region
    $region2: #{tpu_custom_call.1} parent=1 // pred_check
      _
    $region3: #{tpu_custom_call.1} parent=1 // pred_check_branch
      %11 = sbr.rel (0) target = $region5
    $region4: #{tpu_custom_call.1} parent=1 // pred_region
      %13 = vsyncadd [#allocation3], 0
      %s15 = sshll.u32 %s0, 4
      %s16 = int_to_ptr.hbm [resolvable:$true] %s15
      %s17 = sshll.u32 [#allocation2], 4
      %s18 = int_to_ptr.vmem [resolvable:$true] %s17
      %20 = dma.hbm_to_vmem [thread:$0]  %s16, 256, %s18, [#allocation3]
    $region5: #{tpu_custom_call.1} parent=1 // pred_fallthru
      _
    // Predicated region
    $region6: #{tpu_custom_call.1} parent=1 // pred_check
      _
    $region7: #{tpu_custom_call.1} parent=1 // pred_check_branch
      %22 = sbr.rel (0) target = $region9
    $region8: #{tpu_custom_call.1} parent=1 // pred_region
      %24 = vsyncadd [#allocation6], 0
      %s25 = sshll.u32 %s1, 4
      %s26 = int_to_ptr.hbm [resolvable:$true] %s25
      %s27 = sshll.u32 [#allocation5], 4
      %s28 = int_to_ptr.vmem [resolvable:$true] %s27
      %33 = dma.hbm_to_vmem [thread:$0]  %s26, 256, %s28, [#allocation6], 128, 128, 8
    $region9: #{tpu_custom_call.1} parent=1 // pred_fallthru
      _
    // Predicated region
    $region10: #{tpu_custom_call.1} parent=1 // pred_check
      _
    $region11: #{tpu_custom_call.1} parent=1 // pred_check_branch
      %35 = sbr.rel (0) target = $region13
    $region12: #{tpu_custom_call.1} parent=1 // pred_region
      %37 = dma.done [#allocation3], 256
    $region13: #{tpu_custom_call.1} parent=1 // pred_fallthru
      _
    // Predicated region
    $region14: #{tpu_custom_call.1} parent=1 // pred_check
      _
    $region15: #{tpu_custom_call.1} parent=1 // pred_check_branch
      %39 = sbr.rel (0) target = $region17
    $region16: #{tpu_custom_call.1} parent=1 // pred_region
      %41 = dma.done [#allocation6], 256
    $region17: #{tpu_custom_call.1} parent=1 // pred_fallthru
      _
    %v42 = vld [vmem:[#allocation2] sm:$0xff]
    %v43 = vld [vmem:[#allocation2 + $0x8] sm:$0xff]
    %v44 = vlaneseq
    %v45 = vshrl.u32 %v44, 7
    %v46 = vadd.s32 %v45, 8
    %v47 = vcvt.s32.f32 %v45
    %v48 = vcvt.s32.f32 %v46
    %v51 = vperm.slane %v42, 0
    %v52 = vperm.slane %v42, 4
    %v53 = vperm.slane %v43, 0
    %v54 = vperm.slane %v43, 4
    %v59 = vperm.slane %v51, 0
    %v60 = vperm.slane %v52, 0
    %v61 = vperm.slane %v53, 0
    %v62 = vperm.slane %v54, 0
    %vm63 = vcmp.eq.f32.partialorder %v47, %v59
    %vm64 = vcmp.eq.f32.partialorder %v47, %v60
    %vm65 = vcmp.eq.f32.partialorder %v47, %v61
    %vm66 = vcmp.eq.f32.partialorder %v47, %v62
    %vm67 = vcmp.eq.f32.partialorder %v48, %v59
    %vm68 = vcmp.eq.f32.partialorder %v48, %v60
    %vm69 = vcmp.eq.f32.partialorder %v48, %v61
    %vm70 = vcmp.eq.f32.partialorder %v48, %v62
    %v71 = vsel %vm63, 1, 0
    %v72 = vsel %vm64, 1, 0
    %v73 = vsel %vm65, 1, 0
    %v74 = vsel %vm66, 1, 0
    %v75 = vsel %vm67, 1, 0
    %v76 = vsel %vm68, 1, 0
    %v77 = vsel %vm69, 1, 0
    %v78 = vsel %vm70, 1, 0
    %v79 = vcvt.s32.f32 %v71
    %v80 = vcvt.s32.f32 %v72
    %v81 = vcvt.s32.f32 %v73
    %v82 = vcvt.s32.f32 %v74
    %v83 = vcvt.s32.f32 %v75
    %v84 = vcvt.s32.f32 %v76
    %v85 = vcvt.s32.f32 %v77
    %v86 = vcvt.s32.f32 %v78
    %v87 = vld [vmem:[#allocation5] sm:$0xff]
    %v88 = vld [vmem:[#allocation5 + $0x8] sm:$0xf]
    %vm89 = vcmask 130048
    %v91 = vsel %vm89, %v87, 0
    %v94 = vsel %vm89, %v88, 0
    %96 = vmatpush.msra.mxu0 0.0
    %97 = vmatpush.msra.mxu0 0.0
    %98 = vmatpush.msra.mxu0 0.0
    %99 = vmatpush.msra.mxu0 0.0
    %100 = vmatpush.msra.mxu0 0.0
    %101 = vmatpush.msra.mxu0 0.0
    %102 = vmatpush.msra.mxu0 0.0
    %103 = vmatpush.msra.mxu0 0.0
    %104 = vmatpush.msra.mxu0 0.0
    %105 = vmatpush.msra.mxu0 0.0
    %106 = vmatpush.msra.mxu0 0.0
    %107 = vmatpush.msra.mxu0 0.0
    %108 = vmatpush.msra.mxu0 0.0
    %109 = vmatpush.msra.mxu0 0.0
    %110 = vmatpush.msra.mxu0 %v83
    %111 = vmatpush.msra.mxu0 %v79
    %112 = vmatmul.f32.gmra.mxu0 %v91
    %v113 = vpop.f32.mrf.mxu0
    %v114 = vadd.f32 0.0, %v113
    %115 = vmatmul.f32.gmra.mxu0 %v94
    %v116 = vpop.f32.mrf.mxu0
    %v117 = vadd.f32 0.0, %v116
    %118 = vdwg.mxu0
    %119 = vmatpush.msra.mxu0 0.0
    %120 = vmatpush.msra.mxu0 0.0
    %121 = vmatpush.msra.mxu0 0.0
    %122 = vmatpush.msra.mxu0 0.0
    %123 = vmatpush.msra.mxu0 0.0
    %124 = vmatpush.msra.mxu0 0.0
    %125 = vmatpush.msra.mxu0 0.0
    %126 = vmatpush.msra.mxu0 0.0
    %127 = vmatpush.msra.mxu0 0.0
    %128 = vmatpush.msra.mxu0 0.0
    %129 = vmatpush.msra.mxu0 0.0
    %130 = vmatpush.msra.mxu0 0.0
    %131 = vmatpush.msra.mxu0 0.0
    %132 = vmatpush.msra.mxu0 0.0
    %133 = vmatpush.msra.mxu0 %v84
    %134 = vmatpush.msra.mxu0 %v80
    %135 = vmatmul.f32.gmra.mxu0 %v91
    %v136 = vpop.f32.mrf.mxu0
    %v137 = vadd.f32 0.0, %v136
    %138 = vmatmul.f32.gmra.mxu0 %v94
    %v139 = vpop.f32.mrf.mxu0
    %v140 = vadd.f32 0.0, %v139
    %141 = vdwg.mxu0
    %142 = vmatpush.msra.mxu0 0.0
    %143 = vmatpush.msra.mxu0 0.0
    %144 = vmatpush.msra.mxu0 0.0
    %145 = vmatpush.msra.mxu0 0.0
    %146 = vmatpush.msra.mxu0 0.0
    %147 = vmatpush.msra.mxu0 0.0
    %148 = vmatpush.msra.mxu0 0.0
    %149 = vmatpush.msra.mxu0 0.0
    %150 = vmatpush.msra.mxu0 0.0
    %151 = vmatpush.msra.mxu0 0.0
    %152 = vmatpush.msra.mxu0 0.0
    %153 = vmatpush.msra.mxu0 0.0
    %154 = vmatpush.msra.mxu0 0.0
    %155 = vmatpush.msra.mxu0 0.0
    %156 = vmatpush.msra.mxu0 %v85
    %157 = vmatpush.msra.mxu0 %v81
    %158 = vmatmul.f32.gmra.mxu0 %v91
    %v159 = vpop.f32.mrf.mxu0
    %v160 = vadd.f32 0.0, %v159
    %161 = vmatmul.f32.gmra.mxu0 %v94
    %v162 = vpop.f32.mrf.mxu0
    %v163 = vadd.f32 0.0, %v162
    %164 = vdwg.mxu0
    %165 = vmatpush.msra.mxu0 0.0
    %166 = vmatpush.msra.mxu0 0.0
    %167 = vmatpush.msra.mxu0 0.0
    %168 = vmatpush.msra.mxu0 0.0
    %169 = vmatpush.msra.mxu0 0.0
    %170 = vmatpush.msra.mxu0 0.0
    %171 = vmatpush.msra.mxu0 0.0
    %172 = vmatpush.msra.mxu0 0.0
    %173 = vmatpush.msra.mxu0 0.0
    %174 = vmatpush.msra.mxu0 0.0
    %175 = vmatpush.msra.mxu0 0.0
    %176 = vmatpush.msra.mxu0 0.0
    %177 = vmatpush.msra.mxu0 0.0
    %178 = vmatpush.msra.mxu0 0.0
    %179 = vmatpush.msra.mxu0 %v86
    %180 = vmatpush.msra.mxu0 %v82
    %181 = vmatmul.f32.gmra.mxu0 %v91
    %v182 = vpop.f32.mrf.mxu0
    %v183 = vadd.f32 0.0, %v182
    %184 = vmatmul.f32.gmra.mxu0 %v94
    %v185 = vpop.f32.mrf.mxu0
    %v186 = vadd.f32 0.0, %v185
    %187 = vdwg.mxu0
    %v188 = vperm.slane %v42, 1
    %v189 = vperm.slane %v42, 5
    %v190 = vperm.slane %v43, 1
    %v191 = vperm.slane %v43, 5
    %v196 = vperm.slane %v188, 1
    %v197 = vperm.slane %v189, 1
    %v198 = vperm.slane %v190, 1
    %v199 = vperm.slane %v191, 1
    %v200 = vmul.f32 %v196, %v114
    %v201 = vmul.f32 %v197, %v137
    %v202 = vmul.f32 %v198, %v160
    %v203 = vmul.f32 %v199, %v183
    %v204 = vperm.slane %v42, 2
    %v205 = vperm.slane %v42, 6
    %v206 = vperm.slane %v43, 2
    %v207 = vperm.slane %v43, 6
    %v212 = vperm.slane %v204, 2
    %v213 = vperm.slane %v205, 2
    %v214 = vperm.slane %v206, 2
    %v215 = vperm.slane %v207, 2
    %v216 = vmul.f32 %v212, %v114
    %v217 = vmul.f32 %v213, %v137
    %v218 = vmul.f32 %v214, %v160
    %v219 = vmul.f32 %v215, %v183
    %v224 = vrot.slane %v216, 4
    %v225 = vrot.slane %v217, 4
    %v226 = vrot.slane %v218, 4
    %v227 = vrot.slane %v219, 4
    %v232 = vadd.f32 %v200, %v224
    %v233 = vadd.f32 %v201, %v225
    %v234 = vadd.f32 %v202, %v226
    %v235 = vadd.f32 %v203, %v227
    %v236 = vperm.slane %v42, 3
    %v237 = vperm.slane %v42, 7
    %v238 = vperm.slane %v43, 3
    %v239 = vperm.slane %v43, 7
    %v244 = vperm.slane %v236, 3
    %v245 = vperm.slane %v237, 3
    %v246 = vperm.slane %v238, 3
    %v247 = vperm.slane %v239, 3
    %v248 = vmul.f32 %v244, %v117
    %v249 = vmul.f32 %v245, %v140
    %v250 = vmul.f32 %v246, %v163
    %v251 = vmul.f32 %v247, %v186
    %v252 = vadd.f32 %v232, %v248
    %v253 = vadd.f32 %v233, %v249
    %v254 = vadd.f32 %v234, %v250
    %v255 = vadd.f32 %v235, %v251
    %vm256 = vcmp.lt.f32.partialorder %v42, 0.0
    %vm257 = vcmp.lt.f32.partialorder %v43, 0.0
    %v258 = vsel %vm256, 1, 0
    %v259 = vsel %vm257, 1, 0
    %v260 = vcvt.s32.f32 %v258
    %v261 = vcvt.s32.f32 %v259
    %v264 = vperm.slane %v260, 0
    %v265 = vperm.slane %v260, 4
    %v266 = vperm.slane %v261, 0
    %v267 = vperm.slane %v261, 4
    %v272 = vadd.f32 %v252, %v264
    %v273 = vadd.f32 %v253, %v265
    %v274 = vadd.f32 %v254, %v266
    %v275 = vadd.f32 %v255, %v267
    %v280 = vrot.slane %v273, 7
    %v281 = vrot.slane %v274, 6
    %v282 = vrot.slane %v275, 5
    %vm283 = vcmask 1040384
    %v284 = vsel %vm283, %v272, %v280
    %vm285 = vcmask 1042434
    %v286 = vsel %vm285, %v281, %v282
    %vm287 = vcmask 1041408
    %v288 = vsel %vm287, %v284, %v286
    %v290 = vlaneseq
    %vm291 = vcmp.ge.s32.totalorder %v290, 0
    %vm292 = vcmp.lt.s32.totalorder %v290, 512
    %vm293 = vmand %vm291, %vm292
    %294 = vst.msk [vmem:[#allocation7] ss:$4 sm:$0xf] %vm293, %v288
    %295 = vst [vmem:[#allocation1] sm:$0xff] %v272
    %296 = vst [vmem:[#allocation1 + $0x9] sm:$0xff] %v273
    %297 = vst [vmem:[#allocation1 + $0x12] sm:$0xff] %v274
    %298 = vst [vmem:[#allocation1 + $0x1b] sm:$0xff] %v275
    %s299 = scalar_lea.vmem [#allocation1], 1
    %v300 = vld [vmem:[%s299] ss:$9 sm:$0xff]
    %s302 = scalar_lea.vmem [#allocation7], 1
    %303 = vst.msk [vmem:[%s302] ss:$4 sm:$0xf] %vm293, %v300
    %304 = vst [vmem:[#allocation1] sm:$0xff] %v272
    %305 = vst [vmem:[#allocation1 + $0x9] sm:$0xff] %v273
    %306 = vst [vmem:[#allocation1 + $0x12] sm:$0xff] %v274
    %307 = vst [vmem:[#allocation1 + $0x1b] sm:$0xff] %v275
    %s308 = scalar_lea.vmem [#allocation1], 2
    %v309 = vld [vmem:[%s308] ss:$9 sm:$0xff]
    %s311 = scalar_lea.vmem [#allocation7], 2
    %312 = vst.msk [vmem:[%s311] ss:$4 sm:$0xf] %vm293, %v309
    %s313 = scalar_lea.vmem [#allocation7], 3
    %314 = vst.msk [vmem:[%s313] ss:$4 sm:$0xf] %vm293, 1.0
    // Predicated region
    $region18: #{tpu_custom_call.1} parent=1 // pred_check
      _
    $region19: #{tpu_custom_call.1} parent=1 // pred_check_branch
      %316 = sbr.rel (0) target = $region21
    $region20: #{tpu_custom_call.1} parent=1 // pred_region
      %318 = vsyncadd [#allocation4], 0
      %s320 = sshll.u32 [#allocation7], 4
      %s321 = int_to_ptr.vmem [resolvable:$true] %s320
      %s322 = sshll.u32 %s2, 4
      %s323 = int_to_ptr.hbm [resolvable:$true] %s322
      %325 = dma.vmem_to_hbm [thread:$0]  %s321, 256, %s323, [#allocation4]
    $region21: #{tpu_custom_call.1} parent=1 // pred_fallthru
      _
    // Predicated region
    $region22: #{tpu_custom_call.1} parent=1 // pred_check
      _
    $region23: #{tpu_custom_call.1} parent=1 // pred_check_branch
      %327 = sbr.rel (0) target = $region25
    $region24: #{tpu_custom_call.1} parent=1 // pred_region
      %329 = dma.done [#allocation4], 256
    $region25: #{tpu_custom_call.1} parent=1 // pred_fallthru
      _
    %330 = vsyncpa [#allocation3], 1
    %331 = vsyncpa [#allocation6], 1
    %332 = vsyncpa [#allocation4], 1

</llo_original>
